<compile_context>
chip_gen: v7x
topology: tpu7x:2x2x1
jax: 0.10.0
libtpu: 0.0.40
codegen_flags: <defaults>
</compile_context>

<pallas_src>
import jax
import jax.numpy as jnp
from jax.experimental import pallas as pl
from jax.experimental.pallas import tpu as pltpu


def _round_up(n, m):
    return ((n + m - 1) // m) * m


def make_mlp_kernel(n_layers, out_cols):
    """Fused MLP for one batch tile: all layers computed in VMEM.

    refs = [x, W0, b0, W1, b1, ..., out].  Weights/activations feeding the MXU
    are bf16; bias add, ReLU and the final head are f32.  The layer loop is a
    static Python loop (unrolled at trace time — layer shapes differ).
    """

    def kernel(x_ref, *rest):
        o_ref = rest[-1]
        p = rest[:-1]                              # interleaved [W0, b0, W1, b1, ...]
        h = x_ref[...]                             # bf16 (Bt, F)
        for li in range(n_layers):
            w = p[2 * li][...]                     # bf16 (Kp, Np)
            b = p[2 * li + 1][...]                 # f32  (1,  Np)
            acc = jnp.dot(h, w, preferred_element_type=jnp.float32) + b
            if li < n_layers - 1:
                acc = jnp.maximum(acc, 0.0)        # ReLU on hidden layers only
                h = acc.astype(jnp.bfloat16)       # back to bf16 for next MXU op
            else:
                h = acc                            # final head stays f32
        o_ref[...] = h[:, :out_cols]               # store only the real column(s)

    return kernel


def init_params(key, ndim):
    """Init matching torch.nn.Linear default (U[-1/sqrt(fan_in), +1/sqrt(fan_in)])."""
    dims = list(ndim) + [1]                        # MainNet appends Linear(ndim[-1], 1)
    params = []
    for i in range(len(dims) - 1):
        fan_in, fan_out = dims[i], dims[i + 1]
        bound = 1.0 / float(fan_in) ** 0.5
        key, kw, kb = jax.random.split(key, 3)
        W = jax.random.uniform(kw, (fan_in, fan_out), jnp.float32, -bound, bound)
        b = jax.random.uniform(kb, (fan_out,), jnp.float32, -bound, bound)
        params.append((W, b))
    return params


def pack_params(params, in_features):
    """One-time weight padding/cast (hoisted off the per-call path).

    Each layer's output dim is padded to a multiple of 128 (lane-dense), its
    input dim to the previous layer's padded output (or the raw feature dim for
    layer 0).  Weights -> bf16 for the MXU; biases stay f32 as (1, Np) rows so
    the in-kernel bias add broadcasts without extra reshapes.
    """
    flat = []
    prev = in_features                             # input feature dim left unpadded
    for W, b in params:
        k, n = W.shape
        n_p = _round_up(n, 128)
        Wp = (jnp.zeros((prev, n_p), jnp.float32)
              .at[:k, :n].set(W).astype(jnp.bfloat16))
        bp = jnp.zeros((1, n_p), jnp.float32).at[0, :n].set(b)
        flat += [Wp, bp]
        prev = n_p
    return flat


def tautomerism_forward(x, packed, *, batch_tile=512):
    """Pallas TautomerismConjugatedNet.forward: (B, ndim[0]) -> (B, 1)."""
    B, F = x.shape
    n_layers = len(packed) // 2

    # Batch tile: multiple of 16 (bf16 sublane pack).  If B fits in one tile we
    # shrink the tile to round_up(B, 16) so padding overhead stays minimal.
    Bt = min(batch_tile, _round_up(B, 16))
    Bp = _round_up(B, Bt)

    xb = x.astype(jnp.bfloat16)
    if Bp != B:
        xb = jnp.zeros((Bp, F), jnp.bfloat16).at[:B].set(xb)

    # x / out are tiled along batch; weights & biases keep a constant block
    # index so they are fetched once and stay VMEM-resident across all tiles.
    in_specs = [pl.BlockSpec((Bt, F), lambda i: (i, 0))]
    for a in packed:
        in_specs.append(pl.BlockSpec(a.shape, lambda i: (0, 0)))
    out_specs = pl.BlockSpec((Bt, 1), lambda i: (i, 0))

    # Advisory cost estimate for XLA's scheduler.
    flops = 0
    bytes_accessed = xb.size * 2 + Bp * 4
    for li in range(n_layers):
        W = packed[2 * li]
        bvec = packed[2 * li + 1]
        flops += 2 * Bp * W.shape[0] * W.shape[1]
        bytes_accessed += W.size * 2 + bvec.size * 4

    out = pl.pallas_call(
        make_mlp_kernel(n_layers, 1),
        out_shape=jax.ShapeDtypeStruct((Bp, 1), jnp.float32),
        grid=(Bp // Bt,),
        in_specs=in_specs,
        out_specs=out_specs,
        compiler_params=pltpu.CompilerParams(
            dimension_semantics=("parallel",),
        ),
        cost_estimate=pl.CostEstimate(
            flops=flops, transcendentals=0, bytes_accessed=bytes_accessed),
    )(xb, *packed)

    return out[:B]


def ref_forward(x, params):
    """Pure-JAX f32 reference matching the PyTorch MLP semantics."""
    h = x.astype(jnp.float32)
    for i, (W, b) in enumerate(params):
        h = h @ W + b
        if i < len(params) - 1:
            h = jnp.maximum(h, 0.0)
    return h


if __name__ == "__main__":
    key = jax.random.PRNGKey(0)
    k_param, k_x = jax.random.split(key)

    # Small shapes consistent with the module: ndim=(32, 64, 32), batch=8.
    ndim = (32, 64, 32)
    batch = 8

    params = init_params(k_param, ndim)
    packed = pack_params(params, in_features=ndim[0])   # one-time, off hot path
    x = jax.random.normal(k_x, (batch, ndim[0]), jnp.float32)

    y = tautomerism_forward(x, packed)
    y = jax.block_until_ready(y)

    y_ref = ref_forward(x, params)
    assert y.shape == (batch, 1)
    # bf16 matmul inputs with f32 accumulation -> tolerance loosened vs the
    # full-f32 reference (outputs here are O(0.1-1), error is O(1e-3)).
    assert jnp.allclose(y, y_ref, atol=5e-2, rtol=5e-2), "mismatch vs reference"

    print("KERNEL_OK")
</pallas_src>

<mosaic_0001>
module attributes {stable_mosaic.version = 11 : i64} {
  func.func @kernel(%arg0: i32, %arg1: memref<16x32xbf16, #tpu.memory_space<vmem>>, %arg2: memref<32x128xbf16, #tpu.memory_space<vmem>>, %arg3: memref<1x128xf32, #tpu.memory_space<vmem>>, %arg4: memref<128x128xbf16, #tpu.memory_space<vmem>>, %arg5: memref<1x128xf32, #tpu.memory_space<vmem>>, %arg6: memref<128x128xbf16, #tpu.memory_space<vmem>>, %arg7: memref<1x128xf32, #tpu.memory_space<vmem>>, %arg8: memref<16x1xf32, #tpu.memory_space<vmem>>) attributes {dimension_semantics = [#tpu.dimension_semantics<parallel>], iteration_bounds = array<i64: 1>, scalar_prefetch = 0 : i64, scratch_operands = 0 : i64, tpu.core_type = #tpu.core_type<tc>, window_params = [{transform_indices = @transform_0, window_bounds = array<i64: 16, 32>}, {pipeline_mode = #tpu.pipeline_mode<synchronous>, transform_indices = @transform_1, window_bounds = array<i64: 32, 128>}, {pipeline_mode = #tpu.pipeline_mode<synchronous>, transform_indices = @transform_2, window_bounds = array<i64: 1, 128>}, {pipeline_mode = #tpu.pipeline_mode<synchronous>, transform_indices = @transform_3, window_bounds = array<i64: 128, 128>}, {pipeline_mode = #tpu.pipeline_mode<synchronous>, transform_indices = @transform_4, window_bounds = array<i64: 1, 128>}, {pipeline_mode = #tpu.pipeline_mode<synchronous>, transform_indices = @transform_5, window_bounds = array<i64: 128, 128>}, {pipeline_mode = #tpu.pipeline_mode<synchronous>, transform_indices = @transform_6, window_bounds = array<i64: 1, 128>}, {transform_indices = @transform_7, window_bounds = array<i64: 16, 1>}]} {
    %c0 = arith.constant 0 : index
    %c0_0 = arith.constant 0 : index
    %0 = vector.load %arg1[%c0, %c0_0] : memref<16x32xbf16, #tpu.memory_space<vmem>>, vector<16x32xbf16>
    %c0_1 = arith.constant 0 : index
    %c0_2 = arith.constant 0 : index
    %1 = vector.load %arg2[%c0_1, %c0_2] : memref<32x128xbf16, #tpu.memory_space<vmem>>, vector<32x128xbf16>
    %c0_3 = arith.constant 0 : index
    %c0_4 = arith.constant 0 : index
    %2 = vector.load %arg3[%c0_3, %c0_4] : memref<1x128xf32, #tpu.memory_space<vmem>>, vector<1x128xf32>
    %cst = arith.constant dense<0.000000e+00> : vector<16x128xf32>
    %3 = tpu.matmul %0, %1, %cst {dimension_numbers = #tpu.dot_dimension_numbers<[1], [0], [0], [1], [0, 0, 1, 1], [], []>} : vector<16x32xbf16>, vector<32x128xbf16>, vector<16x128xf32> -> vector<16x128xf32>
    %4 = vector.broadcast %2 : vector<1x128xf32> to vector<16x128xf32>
    %5 = arith.addf %3, %4 : vector<16x128xf32>
    %cst_5 = arith.constant 0.000000e+00 : f32
    %6 = vector.broadcast %cst_5 : f32 to vector<16x128xf32>
    %7 = arith.maximumf %5, %6 : vector<16x128xf32>
    %8 = arith.truncf %7 : vector<16x128xf32> to vector<16x128xbf16>
    %c0_6 = arith.constant 0 : index
    %c0_7 = arith.constant 0 : index
    %9 = vector.load %arg4[%c0_6, %c0_7] : memref<128x128xbf16, #tpu.memory_space<vmem>>, vector<128x128xbf16>
    %c0_8 = arith.constant 0 : index
    %c0_9 = arith.constant 0 : index
    %10 = vector.load %arg5[%c0_8, %c0_9] : memref<1x128xf32, #tpu.memory_space<vmem>>, vector<1x128xf32>
    %cst_10 = arith.constant dense<0.000000e+00> : vector<16x128xf32>
    %11 = tpu.matmul %8, %9, %cst_10 {dimension_numbers = #tpu.dot_dimension_numbers<[1], [0], [0], [1], [0, 0, 1, 1], [], []>} : vector<16x128xbf16>, vector<128x128xbf16>, vector<16x128xf32> -> vector<16x128xf32>
    %12 = vector.broadcast %10 : vector<1x128xf32> to vector<16x128xf32>
    %13 = arith.addf %11, %12 : vector<16x128xf32>
    %cst_11 = arith.constant 0.000000e+00 : f32
    %14 = vector.broadcast %cst_11 : f32 to vector<16x128xf32>
    %15 = arith.maximumf %13, %14 : vector<16x128xf32>
    %16 = arith.truncf %15 : vector<16x128xf32> to vector<16x128xbf16>
    %c0_12 = arith.constant 0 : index
    %c0_13 = arith.constant 0 : index
    %17 = vector.load %arg6[%c0_12, %c0_13] : memref<128x128xbf16, #tpu.memory_space<vmem>>, vector<128x128xbf16>
    %c0_14 = arith.constant 0 : index
    %c0_15 = arith.constant 0 : index
    %18 = vector.load %arg7[%c0_14, %c0_15] : memref<1x128xf32, #tpu.memory_space<vmem>>, vector<1x128xf32>
    %cst_16 = arith.constant dense<0.000000e+00> : vector<16x128xf32>
    %19 = tpu.matmul %16, %17, %cst_16 {dimension_numbers = #tpu.dot_dimension_numbers<[1], [0], [0], [1], [0, 0, 1, 1], [], []>} : vector<16x128xbf16>, vector<128x128xbf16>, vector<16x128xf32> -> vector<16x128xf32>
    %20 = vector.broadcast %18 : vector<1x128xf32> to vector<16x128xf32>
    %21 = arith.addf %19, %20 : vector<16x128xf32>
    %22 = vector.extract_strided_slice %21 {offsets = [0, 0], sizes = [16, 1], strides = [1, 1]} : vector<16x128xf32> to vector<16x1xf32>
    %c0_17 = arith.constant 0 : index
    %c0_18 = arith.constant 0 : index
    %23 = vector.load %arg8[%c0_17, %c0_18] : memref<16x1xf32, #tpu.memory_space<vmem>>, vector<16x1xf32>
    tpu.vector_store %arg8[%c0_17, %c0_18], %22 {strides = array<i32>} : memref<16x1xf32, #tpu.memory_space<vmem>>, vector<16x1xf32>,
    return
  }
  func.func @transform_0(%arg0: i32) -> (i32, i32) {
    %c0_i32 = arith.constant 0 : i32
    %c0_i32_0 = arith.constant 0 : i32
    return %arg0, %c0_i32 : i32, i32
  }
  func.func @transform_1(%arg0: i32) -> (i32, i32) {
    %c0_i32 = arith.constant 0 : i32
    %c0_i32_0 = arith.constant 0 : i32
    %c0_i32_1 = arith.constant 0 : i32
    return %c0_i32, %c0_i32_0 : i32, i32
  }
  func.func @transform_2(%arg0: i32) -> (i32, i32) {
    %c0_i32 = arith.constant 0 : i32
    %c0_i32_0 = arith.constant 0 : i32
    %c0_i32_1 = arith.constant 0 : i32
    return %c0_i32, %c0_i32_0 : i32, i32
  }
  func.func @transform_3(%arg0: i32) -> (i32, i32) {
    %c0_i32 = arith.constant 0 : i32
    %c0_i32_0 = arith.constant 0 : i32
    %c0_i32_1 = arith.constant 0 : i32
    return %c0_i32, %c0_i32_0 : i32, i32
  }
  func.func @transform_4(%arg0: i32) -> (i32, i32) {
    %c0_i32 = arith.constant 0 : i32
    %c0_i32_0 = arith.constant 0 : i32
    %c0_i32_1 = arith.constant 0 : i32
    return %c0_i32, %c0_i32_0 : i32, i32
  }
  func.func @transform_5(%arg0: i32) -> (i32, i32) {
    %c0_i32 = arith.constant 0 : i32
    %c0_i32_0 = arith.constant 0 : i32
    %c0_i32_1 = arith.constant 0 : i32
    return %c0_i32, %c0_i32_0 : i32, i32
  }
  func.func @transform_6(%arg0: i32) -> (i32, i32) {
    %c0_i32 = arith.constant 0 : i32
    %c0_i32_0 = arith.constant 0 : i32
    %c0_i32_1 = arith.constant 0 : i32
    return %c0_i32, %c0_i32_0 : i32, i32
  }
  func.func @transform_7(%arg0: i32) -> (i32, i32) {
    %c0_i32 = arith.constant 0 : i32
    %c0_i32_0 = arith.constant 0 : i32
    return %arg0, %c0_i32 : i32, i32
  }
}

</mosaic_0001>

<llo_original>
// kernel: tpu_custom_call.1
$region0: #{tpu_custom_call.1}
  #allocation0 [shape = 'u32[]', space=smem, size = 0x4, offset = 0x4, fixed_abs, tag = 'smem constant byte address 0x4 - core index']
  #allocation1 [shape = 'u32[144,128]{1,0:T(1,128)}', space=vmem, size = 0x12000, scoped, tag = 'internal scratch']
  %s0 = inlined_call_operand.hbm [shape: bf16[16,32], index: 0, kind: input, shape index: {}]
  %s1 = inlined_call_operand.hbm [shape: bf16[32,128], index: 1, kind: input, shape index: {}]
  %s2 = inlined_call_operand.vmem [shape: f32[1,128], index: 2, kind: input, shape index: {}]
  %s3 = inlined_call_operand.hbm [shape: bf16[128,128], index: 3, kind: input, shape index: {}]
  %s4 = inlined_call_operand.vmem [shape: f32[1,128], index: 4, kind: input, shape index: {}]
  %s5 = inlined_call_operand.hbm [shape: bf16[128,128], index: 5, kind: input, shape index: {}]
  %s6 = inlined_call_operand.vmem [shape: f32[1,128], index: 6, kind: input, shape index: {}]
  %s7 = inlined_call_operand.vmem [shape: f32[16,1], index: 7, kind: output, shape index: {}]
  %s8 = sld [smem:[#allocation0]]
  $region54: #{tpu_custom_call.1} parent=0
    _
  %s10 = ssub.s32 1, %s8
  %s11 = scalar_select 0, %s10, %s8
  $region1: #{tpu_custom_call.1} parent=0
    #allocation2 [shape = 'u8[4096]{0}', space=vmem, size = 0x1000, scoped, tag = 'input window, operand 0, single buffered']
    #allocation3 [shape = 's32[1]{0}', space=sflag, size = 0x4, scoped, tag = 'scoped memory for tpu_custom_call.1']
    #allocation4 [shape = 'u8[8192]{0}', space=vmem, size = 0x2000, scoped, tag = 'input window, operand 1, single buffered']
    #allocation5 [shape = 's32[1]{0}', space=sflag, size = 0x4, scoped, tag = 'scoped memory for tpu_custom_call.1']
    #allocation6 [shape = 'u8[32768]{0}', space=vmem, size = 0x8000, scoped, tag = 'input window, operand 3, single buffered']
    #allocation7 [shape = 'u8[32768]{0}', space=vmem, size = 0x8000, scoped, tag = 'input window, operand 5, single buffered']
    #allocation8 [shape = 's32[1]{0}', space=sflag, size = 0x4, scoped, tag = 'scoped memory for tpu_custom_call.1']
    %12 = vsyncpa [#allocation3], 0
    %13 = vsyncpa [#allocation5], 0
    %14 = vsyncpa [#allocation8], 0
    // Predicated region
    $region2: #{tpu_custom_call.1} parent=1 // pred_check
      _
    $region3: #{tpu_custom_call.1} parent=1 // pred_check_branch
      %16 = sbr.rel (0) target = $region5
    $region4: #{tpu_custom_call.1} parent=1 // pred_region
      %s18 = ssub.s32 128, 128
      %19 = vsyncadd [#allocation3], %s18
      %s20 = sshll.u32 [#allocation2], 4
      %s21 = int_to_ptr.vmem [resolvable:$true] %s20
      %26 = dma.hbm_to_vmem [thread:$0]  %s0, 128, %s21, [#allocation3], 64, 64, 4
    $region5: #{tpu_custom_call.1} parent=1 // pred_fallthru
      _
    // Predicated region
    $region6: #{tpu_custom_call.1} parent=1 // pred_check
      _
    $region7: #{tpu_custom_call.1} parent=1 // pred_check_branch
      %28 = sbr.rel (0) target = $region9
    $region8: #{tpu_custom_call.1} parent=1 // pred_region
      %s30 = ssub.s32 256, 256
      %31 = vsyncadd [#allocation5], %s30
      %s32 = sshll.u32 [#allocation4], 4
      %s33 = int_to_ptr.vmem [resolvable:$true] %s32
      %38 = dma.hbm_to_vmem [thread:$0]  %s1, 256, %s33, [#allocation5], 64, 64, 4
    $region9: #{tpu_custom_call.1} parent=1 // pred_fallthru
      _
    // Predicated region
    $region10: #{tpu_custom_call.1} parent=1 // pred_check
      _
    $region11: #{tpu_custom_call.1} parent=1 // pred_check_branch
      %40 = sbr.rel (0) target = $region13
    $region12: #{tpu_custom_call.1} parent=1 // pred_region
      _
    $region13: #{tpu_custom_call.1} parent=1 // pred_fallthru
      _
    // Predicated region
    $region14: #{tpu_custom_call.1} parent=1 // pred_check
      _
    $region15: #{tpu_custom_call.1} parent=1 // pred_check_branch
      %42 = sbr.rel (0) target = $region17
    $region16: #{tpu_custom_call.1} parent=1 // pred_region
      %s44 = ssub.s32 1024, 1024
      %45 = vsyncadd [#allocation5], %s44
      %s46 = sshll.u32 [#allocation6], 4
      %s47 = int_to_ptr.vmem [resolvable:$true] %s46
      %52 = dma.hbm_to_vmem [thread:$0]  %s3, 1024, %s47, [#allocation5], 64, 64, 4
    $region17: #{tpu_custom_call.1} parent=1 // pred_fallthru
      _
    // Predicated region
    $region18: #{tpu_custom_call.1} parent=1 // pred_check
      _
    $region19: #{tpu_custom_call.1} parent=1 // pred_check_branch
      %54 = sbr.rel (0) target = $region21
    $region20: #{tpu_custom_call.1} parent=1 // pred_region
      _
    $region21: #{tpu_custom_call.1} parent=1 // pred_fallthru
      _
    // Predicated region
    $region22: #{tpu_custom_call.1} parent=1 // pred_check
      _
    $region23: #{tpu_custom_call.1} parent=1 // pred_check_branch
      %56 = sbr.rel (0) target = $region25
    $region24: #{tpu_custom_call.1} parent=1 // pred_region
      %s58 = ssub.s32 1024, 1024
      %59 = vsyncadd [#allocation8], %s58
      %s60 = sshll.u32 [#allocation7], 4
      %s61 = int_to_ptr.vmem [resolvable:$true] %s60
      %66 = dma.hbm_to_vmem [thread:$0]  %s5, 1024, %s61, [#allocation8], 64, 64, 4
    $region25: #{tpu_custom_call.1} parent=1 // pred_fallthru
      _
    // Predicated region
    $region26: #{tpu_custom_call.1} parent=1 // pred_check
      _
    $region27: #{tpu_custom_call.1} parent=1 // pred_check_branch
      %68 = sbr.rel (0) target = $region29
    $region28: #{tpu_custom_call.1} parent=1 // pred_region
      _
    $region29: #{tpu_custom_call.1} parent=1 // pred_fallthru
      _
    // Predicated region
    $region30: #{tpu_custom_call.1} parent=1 // pred_check
      _
    $region31: #{tpu_custom_call.1} parent=1 // pred_check_branch
      %70 = sbr.rel (0) target = $region33
    $region32: #{tpu_custom_call.1} parent=1 // pred_region
      %71 = dma.done [#allocation3], 128
    $region33: #{tpu_custom_call.1} parent=1 // pred_fallthru
      _
    // Predicated region
    $region34: #{tpu_custom_call.1} parent=1 // pred_check
      _
    $region35: #{tpu_custom_call.1} parent=1 // pred_check_branch
      %73 = sbr.rel (0) target = $region37
    $region36: #{tpu_custom_call.1} parent=1 // pred_region
      %74 = dma.done [#allocation5], 256
    $region37: #{tpu_custom_call.1} parent=1 // pred_fallthru
      _
    // Predicated region
    $region38: #{tpu_custom_call.1} parent=1 // pred_check
      _
    $region39: #{tpu_custom_call.1} parent=1 // pred_check_branch
      %76 = sbr.rel (0) target = $region41
    $region40: #{tpu_custom_call.1} parent=1 // pred_region
      %77 = dma.done [#allocation5], 1024
    $region41: #{tpu_custom_call.1} parent=1 // pred_fallthru
      _
    // Predicated region
    $region42: #{tpu_custom_call.1} parent=1 // pred_check
      _
    $region43: #{tpu_custom_call.1} parent=1 // pred_check_branch
      %79 = sbr.rel (0) target = $region45
    $region44: #{tpu_custom_call.1} parent=1 // pred_region
      %80 = dma.done [#allocation8], 1024
    $region45: #{tpu_custom_call.1} parent=1 // pred_fallthru
      _
    %v82 = vld [vmem:[#allocation2] sm:$0xf]
    %v83 = vld [vmem:[#allocation2 + $0x4] sm:$0xf]
    %v84 = vld [vmem:[#allocation4] sm:$0xf]
    %v85 = vld [vmem:[#allocation4 + $0x4] sm:$0xf]
    %v86 = vld [vmem:[#allocation4 + $0x8] sm:$0xf]
    %v87 = vld [vmem:[#allocation4 + $0xc] sm:$0xf]
    %v88 = vld [vmem:[%s2] sm:$0x1]
    %v90 = vlaneseq
    %v91 = vshrl.u32 %v90, 7
    %v92 = vsub.s32 0, %v91
    %v93 = vrot.slane %v88, %v92
    %v97 = vunpack.c.l.b16 %v82
    %v98 = vunpack.c.l.b16 %v83
    %v99 = vpack.c.b16 %v98, %v97
    %v104 = vunpack.c.l.b16 %v84
    %v105 = vunpack.c.l.b16 %v85
    %v106 = vunpack.c.l.b16 %v86
    %v107 = vunpack.c.l.b16 %v87
    %v108 = vpack.c.b16 %v105, %v104
    %v109 = vpack.c.b16 %v107, %v106
    %vm112 = vcmask 261120
    %v114 = vsel %vm112, %v99, 0
    %116 = vmatprep.subr.bf16.mxu0 0
    %117 = vmatpush1.bf16.msra.mxu0 %v108
    %118 = vmatprep.subr.bf16.mxu0 0
    %119 = vmatpush1.bf16.msra.mxu0 %v109
    %120 = vmatprep.subr.bf16.mxu0 0
    %121 = vmatpush1.bf16.msra.mxu0 0
    %122 = vmatprep.subr.bf16.mxu0 0
    %123 = vmatpush1.bf16.msra.mxu0 0
    %124 = vmatprep.subr.bf16.mxu0 0
    %125 = vmatpush1.bf16.msra.mxu0 0
    %126 = vmatprep.subr.bf16.mxu0 0
    %127 = vmatpush1.bf16.msra.mxu0 0
    %128 = vmatprep.subr.bf16.mxu0 0
    %129 = vmatpush1.bf16.msra.mxu0 0
    %130 = vmatprep.subr.bf16.mxu0 0
    %131 = vmatpush1.bf16.msra.mxu0 0
    %132 = vmatprep.subr.bf16.mxu0 0
    %133 = vmatpush1.bf16.msra.mxu0 0
    %134 = vmatprep.subr.bf16.mxu0 0
    %135 = vmatpush1.bf16.msra.mxu0 0
    %136 = vmatprep.subr.bf16.mxu0 0
    %137 = vmatpush1.bf16.msra.mxu0 0
    %138 = vmatprep.subr.bf16.mxu0 0
    %139 = vmatpush1.bf16.msra.mxu0 0
    %140 = vmatprep.subr.bf16.mxu0 0
    %141 = vmatpush1.bf16.msra.mxu0 0
    %142 = vmatprep.subr.bf16.mxu0 0
    %143 = vmatpush1.bf16.msra.mxu0 0
    %144 = vmatprep.subr.bf16.mxu0 0
    %145 = vmatpush1.bf16.msra.mxu0 0
    %146 = vmatprep.subr.bf16.mxu0 0
    %147 = vmatpush1.bf16.msra.mxu0 0
    %148 = vmatprep.mubr.bf16.mxu0 0
    %149 = vmatmul.mubr.bf16.gmra.mrb[0].mxu0 %v114
    %v150 = vpop.f32.mrb[0].mxu0
    %v151 = vadd.f32 %v93, %v150
    %v152 = vpop.f32.mrb[0].mxu0
    %v153 = vpop.f32.mrb[0].mxu0
    %v154 = vadd.f32 %v93, %v153
    %v155 = vpop.f32.mrb[0].mxu0
    %156 = vdwg.mxu0
    %v157 = vmax.f32 %v151, 0.0
    %v158 = vmax.f32 %v154, 0.0
    %v159 = vpack.c.bf16 %v158, %v157
    %v160 = vld [vmem:[#allocation6] sm:$0xf]
    %v161 = vld [vmem:[#allocation6 + $0x4] sm:$0xf]
    %v162 = vld [vmem:[#allocation6 + $0x8] sm:$0xf]
    %v163 = vld [vmem:[#allocation6 + $0xc] sm:$0xf]
    %v164 = vld [vmem:[#allocation6 + $0x10] sm:$0xf]
    %v165 = vld [vmem:[#allocation6 + $0x14] sm:$0xf]
    %v166 = vld [vmem:[#allocation6 + $0x18] sm:$0xf]
    %v167 = vld [vmem:[#allocation6 + $0x1c] sm:$0xf]
    %v168 = vld [vmem:[#allocation6 + $0x20] sm:$0xf]
    %v169 = vld [vmem:[#allocation6 + $0x24] sm:$0xf]
    %v170 = vld [vmem:[#allocation6 + $0x28] sm:$0xf]
    %v171 = vld [vmem:[#allocation6 + $0x2c] sm:$0xf]
    %v172 = vld [vmem:[#allocation6 + $0x30] sm:$0xf]
    %v173 = vld [vmem:[#allocation6 + $0x34] sm:$0xf]
    %v174 = vld [vmem:[#allocation6 + $0x38] sm:$0xf]
    %v175 = vld [vmem:[#allocation6 + $0x3c] sm:$0xf]
    %v176 = vld [vmem:[%s4] sm:$0x1]
    %v178 = vlaneseq
    %v179 = vshrl.u32 %v178, 7
    %v180 = vsub.s32 0, %v179
    %v181 = vrot.slane %v176, %v180
    %v199 = vunpack.c.l.b16 %v160
    %v200 = vunpack.c.l.b16 %v161
    %v201 = vunpack.c.l.b16 %v162
    %v202 = vunpack.c.l.b16 %v163
    %v203 = vunpack.c.l.b16 %v164
    %v204 = vunpack.c.l.b16 %v165
    %v205 = vunpack.c.l.b16 %v166
    %v206 = vunpack.c.l.b16 %v167
    %v207 = vunpack.c.l.b16 %v168
    %v208 = vunpack.c.l.b16 %v169
    %v209 = vunpack.c.l.b16 %v170
    %v210 = vunpack.c.l.b16 %v171
    %v211 = vunpack.c.l.b16 %v172
    %v212 = vunpack.c.l.b16 %v173
    %v213 = vunpack.c.l.b16 %v174
    %v214 = vunpack.c.l.b16 %v175
    %v215 = vpack.c.b16 %v200, %v199
    %v216 = vpack.c.b16 %v202, %v201
    %v217 = vpack.c.b16 %v204, %v203
    %v218 = vpack.c.b16 %v206, %v205
    %v219 = vpack.c.b16 %v208, %v207
    %v220 = vpack.c.b16 %v210, %v209
    %v221 = vpack.c.b16 %v212, %v211
    %v222 = vpack.c.b16 %v214, %v213
    %231 = vmatprep.subr.bf16.mxu0 0
    %232 = vmatpush1.bf16.msra.mxu0 %v215
    %233 = vmatprep.subr.bf16.mxu0 0
    %234 = vmatpush1.bf16.msra.mxu0 %v216
    %235 = vmatprep.subr.bf16.mxu0 0
    %236 = vmatpush1.bf16.msra.mxu0 %v217
    %237 = vmatprep.subr.bf16.mxu0 0
    %238 = vmatpush1.bf16.msra.mxu0 %v218
    %239 = vmatprep.subr.bf16.mxu0 0
    %240 = vmatpush1.bf16.msra.mxu0 %v219
    %241 = vmatprep.subr.bf16.mxu0 0
    %242 = vmatpush1.bf16.msra.mxu0 %v220
    %243 = vmatprep.subr.bf16.mxu0 0
    %244 = vmatpush1.bf16.msra.mxu0 %v221
    %245 = vmatprep.subr.bf16.mxu0 0
    %246 = vmatpush1.bf16.msra.mxu0 %v222
    %247 = vmatprep.subr.bf16.mxu0 0
    %248 = vmatpush1.bf16.msra.mxu0 0
    %249 = vmatprep.subr.bf16.mxu0 0
    %250 = vmatpush1.bf16.msra.mxu0 0
    %251 = vmatprep.subr.bf16.mxu0 0
    %252 = vmatpush1.bf16.msra.mxu0 0
    %253 = vmatprep.subr.bf16.mxu0 0
    %254 = vmatpush1.bf16.msra.mxu0 0
    %255 = vmatprep.subr.bf16.mxu0 0
    %256 = vmatpush1.bf16.msra.mxu0 0
    %257 = vmatprep.subr.bf16.mxu0 0
    %258 = vmatpush1.bf16.msra.mxu0 0
    %259 = vmatprep.subr.bf16.mxu0 0
    %260 = vmatpush1.bf16.msra.mxu0 0
    %261 = vmatprep.subr.bf16.mxu0 0
    %262 = vmatpush1.bf16.msra.mxu0 0
    %263 = vmatprep.mubr.bf16.mxu0 0
    %264 = vmatmul.mubr.bf16.gmra.mrb[0].mxu0 %v159
    %v265 = vpop.f32.mrb[0].mxu0
    %v266 = vadd.f32 %v181, %v265
    %v267 = vpop.f32.mrb[0].mxu0
    %v268 = vpop.f32.mrb[0].mxu0
    %v269 = vadd.f32 %v181, %v268
    %v270 = vpop.f32.mrb[0].mxu0
    %271 = vdwg.mxu0
    %v272 = vmax.f32 %v266, 0.0
    %v273 = vmax.f32 %v269, 0.0
    %v274 = vpack.c.bf16 %v273, %v272
    %v275 = vld [vmem:[#allocation7] sm:$0xf]
    %v276 = vld [vmem:[#allocation7 + $0x4] sm:$0xf]
    %v277 = vld [vmem:[#allocation7 + $0x8] sm:$0xf]
    %v278 = vld [vmem:[#allocation7 + $0xc] sm:$0xf]
    %v279 = vld [vmem:[#allocation7 + $0x10] sm:$0xf]
    %v280 = vld [vmem:[#allocation7 + $0x14] sm:$0xf]
    %v281 = vld [vmem:[#allocation7 + $0x18] sm:$0xf]
    %v282 = vld [vmem:[#allocation7 + $0x1c] sm:$0xf]
    %v283 = vld [vmem:[#allocation7 + $0x20] sm:$0xf]
    %v284 = vld [vmem:[#allocation7 + $0x24] sm:$0xf]
    %v285 = vld [vmem:[#allocation7 + $0x28] sm:$0xf]
    %v286 = vld [vmem:[#allocation7 + $0x2c] sm:$0xf]
    %v287 = vld [vmem:[#allocation7 + $0x30] sm:$0xf]
    %v288 = vld [vmem:[#allocation7 + $0x34] sm:$0xf]
    %v289 = vld [vmem:[#allocation7 + $0x38] sm:$0xf]
    %v290 = vld [vmem:[#allocation7 + $0x3c] sm:$0xf]
    %v291 = vld [vmem:[%s6] sm:$0x1]
    %v293 = vlaneseq
    %v294 = vshrl.u32 %v293, 7
    %v295 = vsub.s32 0, %v294
    %v296 = vrot.slane %v291, %v295
    %v314 = vunpack.c.l.b16 %v275
    %v315 = vunpack.c.l.b16 %v276
    %v316 = vunpack.c.l.b16 %v277
    %v317 = vunpack.c.l.b16 %v278
    %v318 = vunpack.c.l.b16 %v279
    %v319 = vunpack.c.l.b16 %v280
    %v320 = vunpack.c.l.b16 %v281
    %v321 = vunpack.c.l.b16 %v282
    %v322 = vunpack.c.l.b16 %v283
    %v323 = vunpack.c.l.b16 %v284
    %v324 = vunpack.c.l.b16 %v285
    %v325 = vunpack.c.l.b16 %v286
    %v326 = vunpack.c.l.b16 %v287
    %v327 = vunpack.c.l.b16 %v288
    %v328 = vunpack.c.l.b16 %v289
    %v329 = vunpack.c.l.b16 %v290
    %v330 = vpack.c.b16 %v315, %v314
    %v331 = vpack.c.b16 %v317, %v316
    %v332 = vpack.c.b16 %v319, %v318
    %v333 = vpack.c.b16 %v321, %v320
    %v334 = vpack.c.b16 %v323, %v322
    %v335 = vpack.c.b16 %v325, %v324
    %v336 = vpack.c.b16 %v327, %v326
    %v337 = vpack.c.b16 %v329, %v328
    %346 = vmatprep.subr.bf16.mxu0 0
    %347 = vmatpush1.bf16.msra.mxu0 %v330
    %348 = vmatprep.subr.bf16.mxu0 0
    %349 = vmatpush1.bf16.msra.mxu0 %v331
    %350 = vmatprep.subr.bf16.mxu0 0
    %351 = vmatpush1.bf16.msra.mxu0 %v332
    %352 = vmatprep.subr.bf16.mxu0 0
    %353 = vmatpush1.bf16.msra.mxu0 %v333
    %354 = vmatprep.subr.bf16.mxu0 0
    %355 = vmatpush1.bf16.msra.mxu0 %v334
    %356 = vmatprep.subr.bf16.mxu0 0
    %357 = vmatpush1.bf16.msra.mxu0 %v335
    %358 = vmatprep.subr.bf16.mxu0 0
    %359 = vmatpush1.bf16.msra.mxu0 %v336
    %360 = vmatprep.subr.bf16.mxu0 0
    %361 = vmatpush1.bf16.msra.mxu0 %v337
    %362 = vmatprep.subr.bf16.mxu0 0
    %363 = vmatpush1.bf16.msra.mxu0 0
    %364 = vmatprep.subr.bf16.mxu0 0
    %365 = vmatpush1.bf16.msra.mxu0 0
    %366 = vmatprep.subr.bf16.mxu0 0
    %367 = vmatpush1.bf16.msra.mxu0 0
    %368 = vmatprep.subr.bf16.mxu0 0
    %369 = vmatpush1.bf16.msra.mxu0 0
    %370 = vmatprep.subr.bf16.mxu0 0
    %371 = vmatpush1.bf16.msra.mxu0 0
    %372 = vmatprep.subr.bf16.mxu0 0
    %373 = vmatpush1.bf16.msra.mxu0 0
    %374 = vmatprep.subr.bf16.mxu0 0
    %375 = vmatpush1.bf16.msra.mxu0 0
    %376 = vmatprep.subr.bf16.mxu0 0
    %377 = vmatpush1.bf16.msra.mxu0 0
    %378 = vmatprep.mubr.bf16.mxu0 0
    %379 = vmatmul.mubr.bf16.gmra.mrb[0].mxu0 %v274
    %v380 = vpop.f32.mrb[0].mxu0
    %v381 = vadd.f32 %v296, %v380
    %v382 = vpop.f32.mrb[0].mxu0
    %v383 = vpop.f32.mrb[0].mxu0
    %v384 = vadd.f32 %v296, %v383
    %v385 = vpop.f32.mrb[0].mxu0
    %386 = vdwg.mxu0
    %vm387 = vcmask 7168
    %388 = vst.msk [vmem:[%s7] sm:$0xff] %vm387, %v381
    %389 = vst.msk [vmem:[%s7 + $0x8] sm:$0xff] %vm387, %v384
    // Predicated region
    $region46: #{tpu_custom_call.1} parent=1 // pred_check
      _
    $region47: #{tpu_custom_call.1} parent=1 // pred_check_branch
      %391 = sbr.rel (0) target = $region49
    $region48: #{tpu_custom_call.1} parent=1 // pred_region
      _
    $region49: #{tpu_custom_call.1} parent=1 // pred_fallthru
      _
    // Predicated region
    $region50: #{tpu_custom_call.1} parent=1 // pred_check
      _
    $region51: #{tpu_custom_call.1} parent=1 // pred_check_branch
      %393 = sbr.rel (0) target = $region53
    $region52: #{tpu_custom_call.1} parent=1 // pred_region
      _
    $region53: #{tpu_custom_call.1} parent=1 // pred_fallthru
      _
    %394 = vsyncpa [#allocation3], 1
    %395 = vsyncpa [#allocation5], 1
    %396 = vsyncpa [#allocation8], 1

</llo_original>
